<compile_context>
chip_gen: v7x
topology: tpu7x:2x2x1
jax: 0.10.0
libtpu: 0.0.40
codegen_flags: <defaults>
</compile_context>

<pallas_src>
import jax
import jax.numpy as jnp
from jax.experimental import pallas as pl
from jax.experimental.pallas import tpu as pltpu


def _round_up(x, m):
    return (x + m - 1) // m * m


def mlp_kernel(x_ref, w1_ref, b1_ref, w2_ref, b2_ref, w3_ref, b3_ref, o_ref):
    # Layer 1 (the only matmul that matters): (TB, c) @ (c, 32) + (1, 32).
    # f32 accumulation regardless of the streamed x / w1 dtype.
    h1 = jax.nn.sigmoid(
        jnp.dot(x_ref[...], w1_ref[...], preferred_element_type=jnp.float32)
        + b1_ref[...])
    # Layer 2: (TB, 32) @ (32, 8) + (1, 8)
    h2 = jax.nn.sigmoid(
        jnp.dot(h1, w2_ref[...], preferred_element_type=jnp.float32)
        + b2_ref[...])
    # Layer 3 on VPU + XLU lane-reduce instead of a 1-column MXU matmul:
    # (TB, 8) * (1, 8) -> sum over lanes -> (TB, 1)
    o_ref[...] = (
        jnp.sum(h2 * w3_ref[...], axis=-1, keepdims=True) + b3_ref[...]
    )


def _pick_tile_b(B, c, x_itemsize):
    # Per-row VMEM cost of one grid step, double-buffered:
    #   x tile:  2 * c * itemsize
    #   output:  the (tile_b, 1) f32 block is lane-padded to (tile_b, 128)
    #            in VMEM -> 2 * 128 * 4 bytes per row.
    per_row_bytes = 2 * c * x_itemsize + 2 * 128 * 4
    vmem_budget = 36 << 20        # keeps the total well under v7x's 64 MiB/TC
    tile_b = (vmem_budget // per_row_bytes) // 8 * 8
    # ~8 MiB x tiles already push per-step fixed overhead (<~0.35 us) below
    # ~10% of the tile DMA time on all generations; bigger only burns VMEM.
    # (Deeper Buffered() pipelining would not help either: per-tile compute
    # is far smaller than the tile DMA, so the pipeline is DMA-limited.)
    tile_b = min(tile_b, 8192)
    # Give the "parallel" batch axis >= ~4 blocks when B permits so v7x's
    # two TensorCores both get work (harmless on single-TC v5e/v6e).
    tile_b = min(tile_b, _round_up(pl.cdiv(B, 4), 8))
    return max(8, int(tile_b))


def regression1_forward(x, params, *, stream_bf16=False):
    """x: (B, c).  Returns (B, 1) float32.

    params: w1(c,u), b1(1,u), w2(u,v), b2(1,v), w3(1,v), b3(1,1).
    """
    stream_dtype = jnp.bfloat16 if stream_bf16 else jnp.float32
    x = x.astype(stream_dtype)
    B, c = x.shape

    w1 = params["w1"].astype(stream_dtype)       # layer-1 operand matches x
    b1 = params["b1"].astype(jnp.float32)
    w2 = params["w2"].astype(jnp.float32)
    b2 = params["b2"].astype(jnp.float32)
    w3 = params["w3"].astype(jnp.float32)
    b3 = params["b3"].astype(jnp.float32)

    tile_b = _pick_tile_b(B, c, x.dtype.itemsize)

    # Ragged last block instead of jnp.pad: padding would re-materialize all
    # of x in HBM (extra read+write) for a memory-bound kernel.  Out-of-range
    # rows of the final tile compute garbage that is never written past B.
    num_tiles = pl.cdiv(B, tile_b)

    # Same block every step -> stays resident in VMEM (no re-DMA).  Total
    # weight/bias footprint is ~33 KiB, so default buffering is a non-issue.
    resident = lambda shape: pl.BlockSpec(shape, lambda i: (0, 0))

    out = pl.pallas_call(
        mlp_kernel,
        out_shape=jax.ShapeDtypeStruct((B, 1), jnp.float32),
        grid=(num_tiles,),
        in_specs=[
            # Streamed, double-buffered batch tile of x.
            pl.BlockSpec((tile_b, c), lambda i: (i, 0)),
            resident(w1.shape),
            resident(b1.shape),
            resident(w2.shape),
            resident(b2.shape),
            resident(w3.shape),
            resident(b3.shape),
        ],
        # Width-1 output block: lane-padded to (tile_b, 128) in VMEM; its
        # double-buffered cost is included in _pick_tile_b's budget.
        out_specs=pl.BlockSpec((tile_b, 1), lambda i: (i, 0)),
        compiler_params=pltpu.CompilerParams(
            # Independent batch tiles -> shard across v7x's 2 TensorCores.
            dimension_semantics=("parallel",),
            # x stream (<=16 MiB) + lane-padded out (<=8 MiB) + weights +
            # slop at tile_b=8192; safe on v7x (64 MiB/TC) and v5e/v6e.
            vmem_limit_bytes=48 << 20,
        ),
    )(x, w1, b1, w2, b2, w3, b3)
    return out


def init_params(key, c=256, u=32, v=8, dtype=jnp.float32):
    """PyTorch-like uniform(-1/sqrt(fan_in), +1/sqrt(fan_in)) init.

    w1/w2 stored (in, out) so the kernel computes x @ W; w3 stored as the
    (1, v) row used by the VPU layer-3.
    """
    ks = jax.random.split(key, 6)

    def lin(kw, kb, fan_in, fan_out):
        bound = 1.0 / float(fan_in) ** 0.5
        w = jax.random.uniform(kw, (fan_in, fan_out), dtype, -bound, bound)
        b = jax.random.uniform(kb, (1, fan_out), dtype, -bound, bound)
        return w, b

    w1, b1 = lin(ks[0], ks[1], c, u)
    w2, b2 = lin(ks[2], ks[3], u, v)
    w3t, b3 = lin(ks[4], ks[5], v, 1)            # (v, 1), (1, 1)
    return {"w1": w1, "b1": b1, "w2": w2, "b2": b2,
            "w3": w3t.T,                          # (1, v) row for the kernel
            "b3": b3}


def reference_forward(x, p):
    h1 = jax.nn.sigmoid(x @ p["w1"] + p["b1"])
    h2 = jax.nn.sigmoid(h1 @ p["w2"] + p["b2"])
    return h2 @ p["w3"].T + p["b3"]


if __name__ == "__main__":
    key = jax.random.PRNGKey(0)
    kx, kx2, kp = jax.random.split(key, 3)

    c = 256                 # module default
    params = init_params(kp, c=c)

    # Tile-aligned batch.
    B = 8
    x = jax.random.normal(kx, (B, c), dtype=jnp.float32)
    out = jax.block_until_ready(regression1_forward(x, params))
    ref = reference_forward(x, params)
    assert out.shape == (B, 1), out.shape
    assert jnp.allclose(out, ref, atol=1e-5, rtol=1e-5), (out, ref)

    # Non-tile-aligned batch exercises the ragged-last-block (no jnp.pad) path.
    B2 = 20
    x2 = jax.random.normal(kx2, (B2, c), dtype=jnp.float32)
    out2 = jax.block_until_ready(regression1_forward(x2, params))
    ref2 = reference_forward(x2, params)
    assert out2.shape == (B2, 1), out2.shape
    assert jnp.allclose(out2, ref2, atol=1e-5, rtol=1e-5), (out2, ref2)

    print("KERNEL_OK")
</pallas_src>

<mosaic_0001>
module attributes {stable_mosaic.version = 11 : i64} {
  func.func @mlp_kernel(%arg0: i32, %arg1: memref<8x256xf32, #tpu.memory_space<vmem>>, %arg2: memref<256x32xf32, #tpu.memory_space<vmem>>, %arg3: memref<1x32xf32, #tpu.memory_space<vmem>>, %arg4: memref<32x8xf32, #tpu.memory_space<vmem>>, %arg5: memref<1x8xf32, #tpu.memory_space<vmem>>, %arg6: memref<1x8xf32, #tpu.memory_space<vmem>>, %arg7: memref<1x1xf32, #tpu.memory_space<vmem>>, %arg8: memref<8x1xf32, #tpu.memory_space<vmem>>) attributes {dimension_semantics = [#tpu.dimension_semantics<parallel>], iteration_bounds = array<i64: 1>, scalar_prefetch = 0 : i64, scratch_operands = 0 : i64, tpu.core_type = #tpu.core_type<tc>, window_params = [{transform_indices = @transform_0, window_bounds = array<i64: 8, 256>}, {pipeline_mode = #tpu.pipeline_mode<synchronous>, transform_indices = @transform_1, window_bounds = array<i64: 256, 32>}, {pipeline_mode = #tpu.pipeline_mode<synchronous>, transform_indices = @transform_2, window_bounds = array<i64: 1, 32>}, {pipeline_mode = #tpu.pipeline_mode<synchronous>, transform_indices = @transform_3, window_bounds = array<i64: 32, 8>}, {pipeline_mode = #tpu.pipeline_mode<synchronous>, transform_indices = @transform_4, window_bounds = array<i64: 1, 8>}, {pipeline_mode = #tpu.pipeline_mode<synchronous>, transform_indices = @transform_5, window_bounds = array<i64: 1, 8>}, {pipeline_mode = #tpu.pipeline_mode<synchronous>, transform_indices = @transform_6, window_bounds = array<i64: 1, 1>}, {transform_indices = @transform_7, window_bounds = array<i64: 8, 1>}]} {
    %c0 = arith.constant 0 : index
    %c0_0 = arith.constant 0 : index
    %0 = vector.load %arg1[%c0, %c0_0] : memref<8x256xf32, #tpu.memory_space<vmem>>, vector<8x256xf32>
    %c0_1 = arith.constant 0 : index
    %c0_2 = arith.constant 0 : index
    %1 = vector.load %arg2[%c0_1, %c0_2] : memref<256x32xf32, #tpu.memory_space<vmem>>, vector<256x32xf32>
    %cst = arith.constant dense<0.000000e+00> : vector<8x32xf32>
    %2 = tpu.matmul %0, %1, %cst {dimension_numbers = #tpu.dot_dimension_numbers<[1], [0], [0], [1], [0, 0, 1, 1], [], []>} : vector<8x256xf32>, vector<256x32xf32>, vector<8x32xf32> -> vector<8x32xf32>
    %c0_3 = arith.constant 0 : index
    %c0_4 = arith.constant 0 : index
    %3 = vector.load %arg3[%c0_3, %c0_4] : memref<1x32xf32, #tpu.memory_space<vmem>>, vector<1x32xf32>
    %4 = vector.broadcast %3 : vector<1x32xf32> to vector<8x32xf32>
    %5 = arith.addf %2, %4 : vector<8x32xf32>
    %6 = arith.negf %5 : vector<8x32xf32>
    %7 = math.exp %6 : vector<8x32xf32>
    %cst_5 = arith.constant 1.000000e+00 : f32
    %8 = vector.broadcast %cst_5 : f32 to vector<8x32xf32>
    %9 = arith.addf %8, %7 : vector<8x32xf32>
    %10 = arith.divf %8, %9 : vector<8x32xf32>
    %c0_6 = arith.constant 0 : index
    %c0_7 = arith.constant 0 : index
    %11 = vector.load %arg4[%c0_6, %c0_7] : memref<32x8xf32, #tpu.memory_space<vmem>>, vector<32x8xf32>
    %cst_8 = arith.constant dense<0.000000e+00> : vector<8x8xf32>
    %12 = tpu.matmul %10, %11, %cst_8 {dimension_numbers = #tpu.dot_dimension_numbers<[1], [0], [0], [1], [0, 0, 1, 1], [], []>} : vector<8x32xf32>, vector<32x8xf32>, vector<8x8xf32> -> vector<8x8xf32>
    %c0_9 = arith.constant 0 : index
    %c0_10 = arith.constant 0 : index
    %13 = vector.load %arg5[%c0_9, %c0_10] : memref<1x8xf32, #tpu.memory_space<vmem>>, vector<1x8xf32>
    %14 = vector.broadcast %13 : vector<1x8xf32> to vector<8x8xf32>
    %15 = arith.addf %12, %14 : vector<8x8xf32>
    %16 = arith.negf %15 : vector<8x8xf32>
    %17 = math.exp %16 : vector<8x8xf32>
    %cst_11 = arith.constant 1.000000e+00 : f32
    %18 = vector.broadcast %cst_11 : f32 to vector<8x8xf32>
    %19 = arith.addf %18, %17 : vector<8x8xf32>
    %20 = arith.divf %18, %19 : vector<8x8xf32>
    %c0_12 = arith.constant 0 : index
    %c0_13 = arith.constant 0 : index
    %21 = vector.load %arg6[%c0_12, %c0_13] : memref<1x8xf32, #tpu.memory_space<vmem>>, vector<1x8xf32>
    %22 = vector.broadcast %21 : vector<1x8xf32> to vector<8x8xf32>
    %23 = arith.mulf %20, %22 : vector<8x8xf32>
    %cst_14 = arith.constant dense<0.000000e+00> : vector<8xf32>
    %24 = vector.multi_reduction <add>, %23, %cst_14 [1] : vector<8x8xf32> to vector<8xf32>
    %25 = vector.shape_cast %24 : vector<8xf32> to vector<8x1xf32>
    %c0_15 = arith.constant 0 : index
    %c0_16 = arith.constant 0 : index
    %26 = vector.load %arg7[%c0_15, %c0_16] : memref<1x1xf32, #tpu.memory_space<vmem>>, vector<1x1xf32>
    %27 = vector.broadcast %26 : vector<1x1xf32> to vector<8x1xf32>
    %28 = arith.addf %25, %27 : vector<8x1xf32>
    %c0_17 = arith.constant 0 : index
    %c0_18 = arith.constant 0 : index
    %29 = vector.load %arg8[%c0_17, %c0_18] : memref<8x1xf32, #tpu.memory_space<vmem>>, vector<8x1xf32>
    tpu.vector_store %arg8[%c0_17, %c0_18], %28 {strides = array<i32>} : memref<8x1xf32, #tpu.memory_space<vmem>>, vector<8x1xf32>,
    return
  }
  func.func @transform_0(%arg0: i32) -> (i32, i32) {
    %c0_i32 = arith.constant 0 : i32
    %c0_i32_0 = arith.constant 0 : i32
    return %arg0, %c0_i32 : i32, i32
  }
  func.func @transform_1(%arg0: i32) -> (i32, i32) {
    %c0_i32 = arith.constant 0 : i32
    %c0_i32_0 = arith.constant 0 : i32
    %c0_i32_1 = arith.constant 0 : i32
    return %c0_i32, %c0_i32_0 : i32, i32
  }
  func.func @transform_2(%arg0: i32) -> (i32, i32) {
    %c0_i32 = arith.constant 0 : i32
    %c0_i32_0 = arith.constant 0 : i32
    %c0_i32_1 = arith.constant 0 : i32
    return %c0_i32, %c0_i32_0 : i32, i32
  }
  func.func @transform_3(%arg0: i32) -> (i32, i32) {
    %c0_i32 = arith.constant 0 : i32
    %c0_i32_0 = arith.constant 0 : i32
    %c0_i32_1 = arith.constant 0 : i32
    return %c0_i32, %c0_i32_0 : i32, i32
  }
  func.func @transform_4(%arg0: i32) -> (i32, i32) {
    %c0_i32 = arith.constant 0 : i32
    %c0_i32_0 = arith.constant 0 : i32
    %c0_i32_1 = arith.constant 0 : i32
    return %c0_i32, %c0_i32_0 : i32, i32
  }
  func.func @transform_5(%arg0: i32) -> (i32, i32) {
    %c0_i32 = arith.constant 0 : i32
    %c0_i32_0 = arith.constant 0 : i32
    %c0_i32_1 = arith.constant 0 : i32
    return %c0_i32, %c0_i32_0 : i32, i32
  }
  func.func @transform_6(%arg0: i32) -> (i32, i32) {
    %c0_i32 = arith.constant 0 : i32
    %c0_i32_0 = arith.constant 0 : i32
    %c0_i32_1 = arith.constant 0 : i32
    return %c0_i32, %c0_i32_0 : i32, i32
  }
  func.func @transform_7(%arg0: i32) -> (i32, i32) {
    %c0_i32 = arith.constant 0 : i32
    %c0_i32_0 = arith.constant 0 : i32
    return %arg0, %c0_i32 : i32, i32
  }
}

</mosaic_0001>

<llo_original>
// kernel: tpu_custom_call.1
$region0: #{tpu_custom_call.1}
  #allocation0 [shape = 'u32[]', space=smem, size = 0x4, offset = 0x4, fixed_abs, tag = 'smem constant byte address 0x4 - core index']
  #allocation1 [shape = 'u32[144,128]{1,0:T(1,128)}', space=vmem, size = 0x12000, scoped, tag = 'internal scratch']
  #allocation2 [shape = 'f32[1,1]{1,0:T(1,128)S(1)}', space=vmem, size = 0x200, scoped, tag = 'scoped memory for tpu_custom_call.1']
  %s0 = inlined_call_operand.vmem [shape: f32[8,256], index: 0, kind: input, shape index: {}]
  %s1 = inlined_call_operand.vmem [shape: f32[256,32], index: 1, kind: input, shape index: {}]
  %s2 = inlined_call_operand.vmem [shape: f32[1,32], index: 2, kind: input, shape index: {}]
  %s3 = inlined_call_operand.vmem [shape: f32[32,8], index: 3, kind: input, shape index: {}]
  %s4 = inlined_call_operand.vmem [shape: f32[1,8], index: 4, kind: input, shape index: {}]
  %s5 = inlined_call_operand.vmem [shape: f32[1,8], index: 5, kind: input, shape index: {}]
  %s6 = inlined_call_operand.<no memory space> [shape: f32[1,1], index: 6, kind: input, shape index: {}]
  %s7 = inlined_call_operand.vmem [shape: f32[8,1], index: 7, kind: output, shape index: {}]
  %s8 = sld [smem:[#allocation0]]
  $region38: #{tpu_custom_call.1} parent=0
    _
  %s10 = ssub.s32 1, %s8
  %s11 = scalar_select 0, %s10, %s8
  %v12 = vstv %s6
  %13 = vst [vmem:[#allocation2] sm:$0x1] %v12
  // Predicated region
  $region2: #{tpu_custom_call.1} parent=0 // pred_check
    _
  $region3: #{tpu_custom_call.1} parent=0 // pred_check_branch
    %15 = sbr.rel (0) target = $region5
  $region4: #{tpu_custom_call.1} parent=0 // pred_region
    _
  $region5: #{tpu_custom_call.1} parent=0 // pred_fallthru
    _
  // Predicated region
  $region6: #{tpu_custom_call.1} parent=0 // pred_check
    _
  $region7: #{tpu_custom_call.1} parent=0 // pred_check_branch
    %17 = sbr.rel (0) target = $region9
  $region8: #{tpu_custom_call.1} parent=0 // pred_region
    _
  $region9: #{tpu_custom_call.1} parent=0 // pred_fallthru
    _
  // Predicated region
  $region10: #{tpu_custom_call.1} parent=0 // pred_check
    _
  $region11: #{tpu_custom_call.1} parent=0 // pred_check_branch
    %19 = sbr.rel (0) target = $region13
  $region12: #{tpu_custom_call.1} parent=0 // pred_region
    _
  $region13: #{tpu_custom_call.1} parent=0 // pred_fallthru
    _
  // Predicated region
  $region14: #{tpu_custom_call.1} parent=0 // pred_check
    _
  $region15: #{tpu_custom_call.1} parent=0 // pred_check_branch
    %21 = sbr.rel (0) target = $region17
  $region16: #{tpu_custom_call.1} parent=0 // pred_region
    _
  $region17: #{tpu_custom_call.1} parent=0 // pred_fallthru
    _
  // Predicated region
  $region18: #{tpu_custom_call.1} parent=0 // pred_check
    _
  $region19: #{tpu_custom_call.1} parent=0 // pred_check_branch
    %23 = sbr.rel (0) target = $region21
  $region20: #{tpu_custom_call.1} parent=0 // pred_region
    _
  $region21: #{tpu_custom_call.1} parent=0 // pred_fallthru
    _
  // Predicated region
  $region22: #{tpu_custom_call.1} parent=0 // pred_check
    _
  $region23: #{tpu_custom_call.1} parent=0 // pred_check_branch
    %25 = sbr.rel (0) target = $region25
  $region24: #{tpu_custom_call.1} parent=0 // pred_region
    _
  $region25: #{tpu_custom_call.1} parent=0 // pred_fallthru
    _
  // Predicated region
  $region26: #{tpu_custom_call.1} parent=0 // pred_check
    _
  $region27: #{tpu_custom_call.1} parent=0 // pred_check_branch
    %27 = sbr.rel (0) target = $region29
  $region28: #{tpu_custom_call.1} parent=0 // pred_region
    _
  $region29: #{tpu_custom_call.1} parent=0 // pred_fallthru
    _
  %v28 = vld [vmem:[%s0] sm:$0xff]
  %v29 = vld [vmem:[%s0 + $0x8] sm:$0xff]
  %v30 = vld [vmem:[%s1] sm:$0xff]
  %v31 = vld [vmem:[%s1 + $0x8] sm:$0xff]
  %v32 = vld [vmem:[%s1 + $0x10] sm:$0xff]
  %v33 = vld [vmem:[%s1 + $0x18] sm:$0xff]
  %v34 = vld [vmem:[%s1 + $0x20] sm:$0xff]
  %v35 = vld [vmem:[%s1 + $0x28] sm:$0xff]
  %v36 = vld [vmem:[%s1 + $0x30] sm:$0xff]
  %v37 = vld [vmem:[%s1 + $0x38] sm:$0xff]
  %v38 = vld [vmem:[%s1 + $0x40] sm:$0xff]
  %v39 = vld [vmem:[%s1 + $0x48] sm:$0xff]
  %v40 = vld [vmem:[%s1 + $0x50] sm:$0xff]
  %v41 = vld [vmem:[%s1 + $0x58] sm:$0xff]
  %v42 = vld [vmem:[%s1 + $0x60] sm:$0xff]
  %v43 = vld [vmem:[%s1 + $0x68] sm:$0xff]
  %v44 = vld [vmem:[%s1 + $0x70] sm:$0xff]
  %v45 = vld [vmem:[%s1 + $0x78] sm:$0xff]
  %v46 = vld [vmem:[%s1 + $0x80] sm:$0xff]
  %v47 = vld [vmem:[%s1 + $0x88] sm:$0xff]
  %v48 = vld [vmem:[%s1 + $0x90] sm:$0xff]
  %v49 = vld [vmem:[%s1 + $0x98] sm:$0xff]
  %v50 = vld [vmem:[%s1 + $0xa0] sm:$0xff]
  %v51 = vld [vmem:[%s1 + $0xa8] sm:$0xff]
  %v52 = vld [vmem:[%s1 + $0xb0] sm:$0xff]
  %v53 = vld [vmem:[%s1 + $0xb8] sm:$0xff]
  %v54 = vld [vmem:[%s1 + $0xc0] sm:$0xff]
  %v55 = vld [vmem:[%s1 + $0xc8] sm:$0xff]
  %v56 = vld [vmem:[%s1 + $0xd0] sm:$0xff]
  %v57 = vld [vmem:[%s1 + $0xd8] sm:$0xff]
  %v58 = vld [vmem:[%s1 + $0xe0] sm:$0xff]
  %v59 = vld [vmem:[%s1 + $0xe8] sm:$0xff]
  %v60 = vld [vmem:[%s1 + $0xf0] sm:$0xff]
  %v61 = vld [vmem:[%s1 + $0xf8] sm:$0xff]
  %v62 = vld [vmem:[%s2] sm:$0x1]
  %v64 = vlaneseq
  %v65 = vshrl.u32 %v64, 7
  %v66 = vsub.s32 0, %v65
  %v67 = vrot.slane %v62, %v66
  %69 = vmatprep.subr.mxu0 0.0
  %70 = vmatpush1.msra.mxu0 %v30
  %71 = vmatprep.subr.mxu0 0.0
  %72 = vmatpush1.msra.mxu0 %v31
  %73 = vmatprep.subr.mxu0 0.0
  %74 = vmatpush1.msra.mxu0 %v32
  %75 = vmatprep.subr.mxu0 0.0
  %76 = vmatpush1.msra.mxu0 %v33
  %77 = vmatprep.subr.mxu0 0.0
  %78 = vmatpush1.msra.mxu0 %v34
  %79 = vmatprep.subr.mxu0 0.0
  %80 = vmatpush1.msra.mxu0 %v35
  %81 = vmatprep.subr.mxu0 0.0
  %82 = vmatpush1.msra.mxu0 %v36
  %83 = vmatprep.subr.mxu0 0.0
  %84 = vmatpush1.msra.mxu0 %v37
  %85 = vmatprep.subr.mxu0 0.0
  %86 = vmatpush1.msra.mxu0 %v38
  %87 = vmatprep.subr.mxu0 0.0
  %88 = vmatpush1.msra.mxu0 %v39
  %89 = vmatprep.subr.mxu0 0.0
  %90 = vmatpush1.msra.mxu0 %v40
  %91 = vmatprep.subr.mxu0 0.0
  %92 = vmatpush1.msra.mxu0 %v41
  %93 = vmatprep.subr.mxu0 0.0
  %94 = vmatpush1.msra.mxu0 %v42
  %95 = vmatprep.subr.mxu0 0.0
  %96 = vmatpush1.msra.mxu0 %v43
  %97 = vmatprep.subr.mxu0 0.0
  %98 = vmatpush1.msra.mxu0 %v44
  %99 = vmatprep.subr.mxu0 0.0
  %100 = vmatpush1.msra.mxu0 %v45
  %101 = vmatprep.subr.mxu0 0.0
  %102 = vmatpush1.msra.mxu0 %v46
  %103 = vmatprep.subr.mxu0 0.0
  %104 = vmatpush1.msra.mxu0 %v47
  %105 = vmatprep.subr.mxu0 0.0
  %106 = vmatpush1.msra.mxu0 %v48
  %107 = vmatprep.subr.mxu0 0.0
  %108 = vmatpush1.msra.mxu0 %v49
  %109 = vmatprep.subr.mxu0 0.0
  %110 = vmatpush1.msra.mxu0 %v50
  %111 = vmatprep.subr.mxu0 0.0
  %112 = vmatpush1.msra.mxu0 %v51
  %113 = vmatprep.subr.mxu0 0.0
  %114 = vmatpush1.msra.mxu0 %v52
  %115 = vmatprep.subr.mxu0 0.0
  %116 = vmatpush1.msra.mxu0 %v53
  %117 = vmatprep.subr.mxu0 0.0
  %118 = vmatpush1.msra.mxu0 %v54
  %119 = vmatprep.subr.mxu0 0.0
  %120 = vmatpush1.msra.mxu0 %v55
  %121 = vmatprep.subr.mxu0 0.0
  %122 = vmatpush1.msra.mxu0 %v56
  %123 = vmatprep.subr.mxu0 0.0
  %124 = vmatpush1.msra.mxu0 %v57
  %125 = vmatprep.subr.mxu0 0.0
  %126 = vmatpush1.msra.mxu0 %v58
  %127 = vmatprep.subr.mxu0 0.0
  %128 = vmatpush1.msra.mxu0 %v59
  %129 = vmatprep.subr.mxu0 0.0
  %130 = vmatpush1.msra.mxu0 %v60
  %131 = vmatprep.subr.mxu0 0.0
  %132 = vmatpush1.msra.mxu0 %v61
  %133 = vmatprep.mubr.f32.mxu0 %v29
  %134 = vmatmul.mubr.f32.gmra.mrb[0].mxu0 %v28
  %v135 = vpop.f32.mrb[0].mxu0
  %v136 = vadd.f32 %v67, %v135
  %v137 = vpop.f32.mrb[0].mxu0
  %138 = vdwg.mxu0
  %v139 = vxor.u32 %v136, 2147483648
  %v140 = vmul.f32 %v139, 1.442695
  %v141 = vpow.pop %v140
  %v142 = vadd.f32 %v141, 1.0
  %v143 = vrcp.pop %v142
  %v144 = vmul.f32 1.0, %v143
  %v145 = vld [vmem:[%s3] sm:$0xff]
  %v146 = vld [vmem:[%s3 + $0x8] sm:$0xff]
  %v147 = vld [vmem:[%s3 + $0x10] sm:$0xff]
  %v148 = vld [vmem:[%s3 + $0x18] sm:$0xff]
  %v149 = vld [vmem:[%s4] sm:$0x1]
  %v151 = vlaneseq
  %v152 = vshrl.u32 %v151, 7
  %v153 = vsub.s32 0, %v152
  %v154 = vrot.slane %v149, %v153
  %vm156 = vcmask 261120
  %v158 = vsel %vm156, %v144, 0
  %160 = vmatprep.subr.mxu0 0.0
  %161 = vmatpush1.msra.mxu0 %v145
  %162 = vmatprep.subr.mxu0 0.0
  %163 = vmatpush1.msra.mxu0 %v146
  %164 = vmatprep.subr.mxu0 0.0
  %165 = vmatpush1.msra.mxu0 %v147
  %166 = vmatprep.subr.mxu0 0.0
  %167 = vmatpush1.msra.mxu0 %v148
  %168 = vmatprep.subr.mxu0 0.0
  %169 = vmatpush1.msra.mxu0 0.0
  %170 = vmatprep.subr.mxu0 0.0
  %171 = vmatpush1.msra.mxu0 0.0
  %172 = vmatprep.subr.mxu0 0.0
  %173 = vmatpush1.msra.mxu0 0.0
  %174 = vmatprep.subr.mxu0 0.0
  %175 = vmatpush1.msra.mxu0 0.0
  %176 = vmatprep.subr.mxu0 0.0
  %177 = vmatpush1.msra.mxu0 0.0
  %178 = vmatprep.subr.mxu0 0.0
  %179 = vmatpush1.msra.mxu0 0.0
  %180 = vmatprep.subr.mxu0 0.0
  %181 = vmatpush1.msra.mxu0 0.0
  %182 = vmatprep.subr.mxu0 0.0
  %183 = vmatpush1.msra.mxu0 0.0
  %184 = vmatprep.subr.mxu0 0.0
  %185 = vmatpush1.msra.mxu0 0.0
  %186 = vmatprep.subr.mxu0 0.0
  %187 = vmatpush1.msra.mxu0 0.0
  %188 = vmatprep.subr.mxu0 0.0
  %189 = vmatpush1.msra.mxu0 0.0
  %190 = vmatprep.subr.mxu0 0.0
  %191 = vmatpush1.msra.mxu0 0.0
  %192 = vmatprep.subr.mxu0 0.0
  %193 = vmatpush1.msra.mxu0 0.0
  %194 = vmatprep.subr.mxu0 0.0
  %195 = vmatpush1.msra.mxu0 0.0
  %196 = vmatprep.subr.mxu0 0.0
  %197 = vmatpush1.msra.mxu0 0.0
  %198 = vmatprep.subr.mxu0 0.0
  %199 = vmatpush1.msra.mxu0 0.0
  %200 = vmatprep.subr.mxu0 0.0
  %201 = vmatpush1.msra.mxu0 0.0
  %202 = vmatprep.subr.mxu0 0.0
  %203 = vmatpush1.msra.mxu0 0.0
  %204 = vmatprep.subr.mxu0 0.0
  %205 = vmatpush1.msra.mxu0 0.0
  %206 = vmatprep.subr.mxu0 0.0
  %207 = vmatpush1.msra.mxu0 0.0
  %208 = vmatprep.subr.mxu0 0.0
  %209 = vmatpush1.msra.mxu0 0.0
  %210 = vmatprep.subr.mxu0 0.0
  %211 = vmatpush1.msra.mxu0 0.0
  %212 = vmatprep.subr.mxu0 0.0
  %213 = vmatpush1.msra.mxu0 0.0
  %214 = vmatprep.subr.mxu0 0.0
  %215 = vmatpush1.msra.mxu0 0.0
  %216 = vmatprep.subr.mxu0 0.0
  %217 = vmatpush1.msra.mxu0 0.0
  %218 = vmatprep.subr.mxu0 0.0
  %219 = vmatpush1.msra.mxu0 0.0
  %220 = vmatprep.subr.mxu0 0.0
  %221 = vmatpush1.msra.mxu0 0.0
  %222 = vmatprep.subr.mxu0 0.0
  %223 = vmatpush1.msra.mxu0 0.0
  %224 = vmatprep.mubr.f32.mxu0 0.0
  %225 = vmatmul.mubr.f32.gmra.mrb[0].mxu0 %v158
  %v226 = vpop.f32.mrb[0].mxu0
  %v227 = vadd.f32 %v154, %v226
  %v228 = vpop.f32.mrb[0].mxu0
  %229 = vdwg.mxu0
  %v230 = vxor.u32 %v227, 2147483648
  %v231 = vmul.f32 %v230, 1.442695
  %v232 = vpow.pop %v231
  %v233 = vadd.f32 %v232, 1.0
  %v234 = vrcp.pop %v233
  %v235 = vmul.f32 1.0, %v234
  %v236 = vld [vmem:[%s5] sm:$0x1]
  %v238 = vlaneseq
  %v239 = vshrl.u32 %v238, 7
  %v240 = vsub.s32 0, %v239
  %v241 = vrot.slane %v236, %v240
  %v243 = vmul.f32 %v235, %v241
  %vm244 = vcmask 64512
  %v245 = vsel %vm244, %v243, 0.0
  %246 = vadd.xlane.f32.xlu0 %v245
  %v247 = vpop.xlane.xlu0 %246
  %v248 = vld [vmem:[#allocation2] sm:$0x1]
  %v250 = vlaneseq
  %v251 = vshrl.u32 %v250, 7
  %v252 = vsub.s32 0, %v251
  %v253 = vrot.slane %v248, %v252
  %v255 = vadd.f32 %v247, %v253
  %vm256 = vcmask 7168
  %257 = vst.msk [vmem:[%s7] sm:$0xff] %vm256, %v255
  // Predicated region
  $region30: #{tpu_custom_call.1} parent=0 // pred_check
    _
  $region31: #{tpu_custom_call.1} parent=0 // pred_check_branch
    %259 = sbr.rel (0) target = $region33
  $region32: #{tpu_custom_call.1} parent=0 // pred_region
    _
  $region33: #{tpu_custom_call.1} parent=0 // pred_fallthru
    _
  // Predicated region
  $region34: #{tpu_custom_call.1} parent=0 // pred_check
    _
  $region35: #{tpu_custom_call.1} parent=0 // pred_check_branch
    %261 = sbr.rel (0) target = $region37
  $region36: #{tpu_custom_call.1} parent=0 // pred_region
    _
  $region37: #{tpu_custom_call.1} parent=0 // pred_fallthru
    _

</llo_original>
